<compile_context>
chip_gen: v7x
topology: tpu7x:2x2x1
jax: 0.10.0
libtpu: 0.0.40
codegen_flags: <defaults>
</compile_context>

<pallas_src>
import jax
import jax.numpy as jnp
from jax.experimental import pallas as pl
from jax.experimental.pallas import tpu as pltpu


def _round_up(x, m):
    return (x + m - 1) // m * m


def _pad2d(a, rows, cols):
    r, c = a.shape
    if r == rows and c == cols:
        return a
    return jnp.pad(a, ((0, rows - r), (0, cols - c)))


def _balanced_tile(n, t_max, align):
    """Largest tile <= t_max (multiple of `align`) that minimizes padding of n.

    Returns (tile, padded_n) with padded_n = tile * num_tiles >= n.
    """
    n_al = _round_up(max(n, 1), align)
    t_cap = max(align, (min(t_max, n_al) // align) * align)
    num = -(-n_al // t_cap)                      # number of tiles
    tile = _round_up(-(-n_al // num), align)     # balanced tile size
    return tile, tile * num


def _vmem_budgets():
    """(tile_budget_bytes, vmem_limit_bytes) derived from physical VMEM."""
    try:
        cap = int(pltpu.get_tpu_info().vmem_capacity_bytes)
    except Exception:
        cap = 64 * 1024 * 1024          # v7x-conservative fallback
    tile_budget = int(cap * 0.55)       # double-buffered tiles stay well under limit
    vmem_limit = int(cap * 0.75)        # headroom under physical for Mosaic internals
    return tile_budget, vmem_limit


def _prefix_out_gemm_kernel(h_ref, w2_ref, b2_ref, o_ref):
    # out_tile = h_tile(bf16) @ w2_tile(bf16)  (f32 accumulate)  + b2_tile(f32)
    out = jnp.dot(h_ref[...], w2_ref[...], preferred_element_type=jnp.float32)
    o_ref[...] = (out + b2_ref[...]).astype(o_ref.dtype)


def prefix_encoder_mlp(x, w1, b1, w2, b2, *, weight_dtype=jnp.bfloat16,
                       out_dtype=jnp.float32, tm_max=512, tn_max=4096):
    """Row-wise Linear(D,H) -> Tanh -> Linear(H,O) on an (M, D) slab -> (M, O)."""
    M, D = x.shape
    H = w1.shape[1]
    O = w2.shape[1]

    # --- First (tiny) Linear + Tanh hoisted to plain XLA ---------------------
    # pre_seq_len x D x H FLOPs are negligible; keeping it out of the kernel
    # removes w1 from VMEM entirely and removes the cross-tile scratch carry.
    h = jnp.tanh(x.astype(jnp.float32) @ w1.astype(jnp.float32)
                 + b1.astype(jnp.float32))                 # (M, H) f32
    h = h.astype(weight_dtype)                             # bf16 into the kernel

    # --- Tiling ---------------------------------------------------------------
    h_pad = _round_up(H, 128)
    tm, m_pad = _balanced_tile(M, tm_max, 8)               # M = pre_seq_len: usually 1 tile

    wbytes = jnp.dtype(weight_dtype).itemsize
    obytes = jnp.dtype(out_dtype).itemsize

    tile_budget, vmem_limit = _vmem_budgets()
    # Per-grid-step VMEM (everything double-buffered by the pipeline):
    #   h: 2*tm*h_pad*wb   w2: 2*h_pad*tn*wb   out: 2*tm*tn*ob   b2: 2*tn*4
    fixed = 2 * tm * h_pad * wbytes
    per_tn = 2 * h_pad * wbytes + 2 * tm * obytes + 2 * 4
    tn_fit = max(128, ((tile_budget - fixed) // max(per_tn, 1) // 128) * 128)
    tn, o_pad = _balanced_tile(O, min(tn_max, tn_fit), 128)

    # --- Pad to lane/sublane-dense shapes (zero padding is exact) ------------
    hp = _pad2d(h, m_pad, h_pad)
    w2p = _pad2d(w2.astype(weight_dtype), h_pad, o_pad)
    b2p = _pad2d(b2.astype(jnp.float32).reshape(1, -1), 1, o_pad)

    m_tiles = m_pad // tm
    o_tiles = o_pad // tn
    grid = (o_tiles, m_tiles)   # O outer (parallel, sharded on v7x), M inner

    cost = pl.CostEstimate(
        flops=2 * m_pad * h_pad * o_pad,
        transcendentals=0,
        bytes_accessed=(h_pad * o_pad * wbytes                               # w2: once
                        + (o_tiles if m_tiles > 1 else 1) * m_pad * h_pad * wbytes
                        + o_pad * 4                                          # b2
                        + m_pad * o_pad * obytes),                           # output
    )

    out = pl.pallas_call(
        _prefix_out_gemm_kernel,
        out_shape=jax.ShapeDtypeStruct((m_pad, o_pad), out_dtype),
        grid_spec=pltpu.PrefetchScalarGridSpec(
            num_scalar_prefetch=0,
            grid=grid,
            in_specs=[
                pl.BlockSpec((tm, h_pad), lambda j, i: (i, 0)),   # h: per M tile
                pl.BlockSpec((h_pad, tn), lambda j, i: (0, j)),   # w2: outer-axis only -> streamed once
                pl.BlockSpec((1, tn), lambda j, i: (0, j)),       # b2: per O tile
            ],
            out_specs=pl.BlockSpec((tm, tn), lambda j, i: (i, j)),
        ),
        compiler_params=pltpu.CompilerParams(
            dimension_semantics=("parallel", "arbitrary"),
            vmem_limit_bytes=vmem_limit,
        ),
        cost_estimate=cost,
    )(hp, w2p, b2p)

    return out[:M, :O]


def prefix_encoder_forward(prefix_ids, params, *, prefix_projection=True):
    """Full PrefixEncoder forward.  prefix_ids: (B, S) int32 -> (B, S, L*2*D)."""
    if not prefix_projection:
        # No-projection branch: plain embedding lookup (cheap glue, no kernel).
        return jnp.take(params["embedding"], prefix_ids, axis=0)

    emb = params["embedding"]            # (pre_seq_len, D)
    w1, b1 = params["w1"], params["b1"]  # (D, H), (1, H)
    w2, b2 = params["w2"], params["b2"]  # (H, O), (1, O)

    # Row-wise MLP commutes with the gather: run the kernel once on the small
    # embedding table, then gather output rows by token id (batch dedup).
    # Note: jnp.take clamps out-of-range ids (PyTorch Embedding would error).
    table_out = prefix_encoder_mlp(emb, w1, b1, w2, b2)   # (pre_seq_len, O)
    return jnp.take(table_out, prefix_ids, axis=0)        # (B, S, O)


def init_params(key, *, pre_seq_len, embed_dim, encoder_layers):
    """Deterministic synthetic parameters matching the module's __init__ shapes."""
    prefix_hidden = embed_dim
    out_dim = encoder_layers * 2 * embed_dim
    k_emb, k_w1, k_b1, k_w2, k_b2 = jax.random.split(key, 5)
    return {
        "embedding": jax.random.normal(k_emb, (pre_seq_len, embed_dim), jnp.float32) * 0.02,
        "w1": jax.random.normal(k_w1, (embed_dim, prefix_hidden), jnp.float32) * 0.02,
        "b1": jax.random.normal(k_b1, (1, prefix_hidden), jnp.float32) * 0.02,
        "w2": jax.random.normal(k_w2, (prefix_hidden, out_dim), jnp.float32) * 0.02,
        "b2": jax.random.normal(k_b2, (1, out_dim), jnp.float32) * 0.02,
    }


if __name__ == "__main__":
    # Small config consistent with the module:
    #   pre_seq_len=8, encoder_embed_dim=32, encoder_layers=2 -> out dim = 2*2*32 = 128
    B, S = 2, 8
    PRE_SEQ_LEN = 8
    EMBED_DIM = 32
    ENC_LAYERS = 2
    OUT_DIM = ENC_LAYERS * 2 * EMBED_DIM

    key = jax.random.PRNGKey(0)
    k_params, k_ids = jax.random.split(key)
    params = init_params(
        k_params,
        pre_seq_len=PRE_SEQ_LEN,
        embed_dim=EMBED_DIM,
        encoder_layers=ENC_LAYERS,
    )
    prefix_ids = jax.random.randint(k_ids, (B, S), 0, PRE_SEQ_LEN, dtype=jnp.int32)

    out = prefix_encoder_forward(prefix_ids, params)
    out = jax.block_until_ready(out)
    assert out.shape == (B, S, OUT_DIM)

    # Pure-JAX reference mirroring the kernel's numerics: first Linear+Tanh in
    # f32 (hoisted XLA GEMM), h/w2 rounded through bf16, f32 accumulation.
    bf = jnp.bfloat16
    h_full = jnp.tanh(params["embedding"] @ params["w1"] + params["b1"])
    h_bf = h_full.astype(bf).astype(jnp.float32)
    w2_bf = params["w2"].astype(bf).astype(jnp.float32)
    table_ref = h_bf @ w2_bf + params["b2"]
    ref = jnp.take(table_ref, prefix_ids, axis=0)

    assert ref.shape == out.shape
    assert jnp.allclose(out, ref, atol=1e-3, rtol=1e-2), (
        float(jnp.max(jnp.abs(out - ref))))

    print("KERNEL_OK")
</pallas_src>

<mosaic_0001>
module attributes {stable_mosaic.version = 11 : i64} {
  func.func @_prefix_out_gemm_kernel(%arg0: i32, %arg1: i32, %arg2: memref<8x128xbf16, #tpu.memory_space<vmem>>, %arg3: memref<128x128xbf16, #tpu.memory_space<vmem>>, %arg4: memref<1x128xf32, #tpu.memory_space<vmem>>, %arg5: memref<8x128xf32, #tpu.memory_space<vmem>>) attributes {dimension_semantics = [#tpu.dimension_semantics<parallel>, #tpu.dimension_semantics<arbitrary>], iteration_bounds = array<i64: 1, 1>, scalar_prefetch = 0 : i64, scratch_operands = 0 : i64, tpu.core_type = #tpu.core_type<tc>, window_params = [{transform_indices = @transform_0, window_bounds = array<i64: 8, 128>}, {transform_indices = @transform_1, window_bounds = array<i64: 128, 128>}, {transform_indices = @transform_2, window_bounds = array<i64: 1, 128>}, {transform_indices = @transform_3, window_bounds = array<i64: 8, 128>}]} {
    %c0 = arith.constant 0 : index
    %c0_0 = arith.constant 0 : index
    %0 = vector.load %arg2[%c0, %c0_0] : memref<8x128xbf16, #tpu.memory_space<vmem>>, vector<8x128xbf16>
    %c0_1 = arith.constant 0 : index
    %c0_2 = arith.constant 0 : index
    %1 = vector.load %arg3[%c0_1, %c0_2] : memref<128x128xbf16, #tpu.memory_space<vmem>>, vector<128x128xbf16>
    %cst = arith.constant dense<0.000000e+00> : vector<8x128xf32>
    %2 = tpu.matmul %0, %1, %cst {dimension_numbers = #tpu.dot_dimension_numbers<[1], [0], [0], [1], [0, 0, 1, 1], [], []>} : vector<8x128xbf16>, vector<128x128xbf16>, vector<8x128xf32> -> vector<8x128xf32>
    %c0_3 = arith.constant 0 : index
    %c0_4 = arith.constant 0 : index
    %3 = vector.load %arg4[%c0_3, %c0_4] : memref<1x128xf32, #tpu.memory_space<vmem>>, vector<1x128xf32>
    %4 = vector.broadcast %3 : vector<1x128xf32> to vector<8x128xf32>
    %5 = arith.addf %2, %4 : vector<8x128xf32>
    %c0_5 = arith.constant 0 : index
    %c0_6 = arith.constant 0 : index
    %6 = vector.load %arg5[%c0_5, %c0_6] : memref<8x128xf32, #tpu.memory_space<vmem>>, vector<8x128xf32>
    tpu.vector_store %arg5[%c0_5, %c0_6], %5 {strides = array<i32>} : memref<8x128xf32, #tpu.memory_space<vmem>>, vector<8x128xf32>,
    return
  }
  func.func @transform_0(%arg0: i32, %arg1: i32) -> (i32, i32) {
    %c0_i32 = arith.constant 0 : i32
    %c0_i32_0 = arith.constant 0 : i32
    return %arg1, %c0_i32 : i32, i32
  }
  func.func @transform_1(%arg0: i32, %arg1: i32) -> (i32, i32) {
    %c0_i32 = arith.constant 0 : i32
    %c0_i32_0 = arith.constant 0 : i32
    return %c0_i32, %arg0 : i32, i32
  }
  func.func @transform_2(%arg0: i32, %arg1: i32) -> (i32, i32) {
    %c0_i32 = arith.constant 0 : i32
    %c0_i32_0 = arith.constant 0 : i32
    return %c0_i32, %arg0 : i32, i32
  }
  func.func @transform_3(%arg0: i32, %arg1: i32) -> (i32, i32) {
    %c0_i32 = arith.constant 0 : i32
    return %arg1, %arg0 : i32, i32
  }
}

</mosaic_0001>

<llo_original>
// kernel: tpu_custom_call.1
$region0: #{tpu_custom_call.1}
  #allocation0 [shape = 'u32[]', space=smem, size = 0x4, offset = 0x4, fixed_abs, tag = 'smem constant byte address 0x4 - core index']
  #allocation1 [shape = 'u32[144,128]{1,0:T(1,128)}', space=vmem, size = 0x12000, scoped, tag = 'internal scratch']
  %s0 = inlined_call_operand.hbm [shape: bf16[8,128], index: 0, kind: input, shape index: {}]
  %s1 = inlined_call_operand.hbm [shape: bf16[128,128], index: 1, kind: input, shape index: {}]
  %s2 = inlined_call_operand.vmem [shape: f32[1,128], index: 2, kind: input, shape index: {}]
  %s3 = inlined_call_operand.hbm [shape: f32[8,128], index: 3, kind: output, shape index: {}]
  %s4 = sld [smem:[#allocation0]]
  $region30: #{tpu_custom_call.1} parent=0
    _
  %s6 = ssub.s32 1, %s4
  %s7 = scalar_select 0, %s6, %s4
  $region1: #{tpu_custom_call.1} parent=0
    #allocation2 [shape = 'u8[2048]{0}', space=vmem, size = 0x800, scoped, tag = 'input window, operand 0, single buffered']
    #allocation3 [shape = 's32[1]{0}', space=sflag, size = 0x4, scoped, tag = 'scoped memory for tpu_custom_call.1']
    #allocation4 [shape = 's32[1]{0}', space=sflag, size = 0x4, scoped, tag = 'scoped memory for tpu_custom_call.1']
    #allocation5 [shape = 'u8[32768]{0}', space=vmem, size = 0x8000, scoped, tag = 'input window, operand 1, single buffered']
    #allocation6 [shape = 's32[1]{0}', space=sflag, size = 0x4, scoped, tag = 'scoped memory for tpu_custom_call.1']
    #allocation7 [shape = 'u8[4096]{0}', space=vmem, size = 0x1000, scoped, tag = 'output window, operand 0, single buffered']
    %8 = vsyncpa [#allocation3], 0
    %9 = vsyncpa [#allocation6], 0
    %10 = vsyncpa [#allocation4], 0
    // Predicated region
    $region2: #{tpu_custom_call.1} parent=1 // pred_check
      _
    $region3: #{tpu_custom_call.1} parent=1 // pred_check_branch
      %12 = sbr.rel (0) target = $region5
    $region4: #{tpu_custom_call.1} parent=1 // pred_region
      %s14 = ssub.s32 64, 64
      %15 = vsyncadd [#allocation3], %s14
      %s17 = sshll.u32 [#allocation2], 4
      %s18 = int_to_ptr.vmem [resolvable:$true] %s17
      %20 = dma.hbm_to_vmem [thread:$0]  %s0, 64, %s18, [#allocation3]
    $region5: #{tpu_custom_call.1} parent=1 // pred_fallthru
      _
    // Predicated region
    $region6: #{tpu_custom_call.1} parent=1 // pred_check
      _
    $region7: #{tpu_custom_call.1} parent=1 // pred_check_branch
      %22 = sbr.rel (0) target = $region9
    $region8: #{tpu_custom_call.1} parent=1 // pred_region
      %s24 = ssub.s32 1024, 1024
      %25 = vsyncadd [#allocation6], %s24
      %s26 = sshll.u32 [#allocation5], 4
      %s27 = int_to_ptr.vmem [resolvable:$true] %s26
      %32 = dma.hbm_to_vmem [thread:$0]  %s1, 1024, %s27, [#allocation6], 64, 64, 4
    $region9: #{tpu_custom_call.1} parent=1 // pred_fallthru
      _
    // Predicated region
    $region10: #{tpu_custom_call.1} parent=1 // pred_check
      _
    $region11: #{tpu_custom_call.1} parent=1 // pred_check_branch
      %34 = sbr.rel (0) target = $region13
    $region12: #{tpu_custom_call.1} parent=1 // pred_region
      _
    $region13: #{tpu_custom_call.1} parent=1 // pred_fallthru
      _
    // Predicated region
    $region14: #{tpu_custom_call.1} parent=1 // pred_check
      _
    $region15: #{tpu_custom_call.1} parent=1 // pred_check_branch
      %36 = sbr.rel (0) target = $region17
    $region16: #{tpu_custom_call.1} parent=1 // pred_region
      %37 = dma.done [#allocation3], 64
    $region17: #{tpu_custom_call.1} parent=1 // pred_fallthru
      _
    // Predicated region
    $region18: #{tpu_custom_call.1} parent=1 // pred_check
      _
    $region19: #{tpu_custom_call.1} parent=1 // pred_check_branch
      %39 = sbr.rel (0) target = $region21
    $region20: #{tpu_custom_call.1} parent=1 // pred_region
      %40 = dma.done [#allocation6], 1024
    $region21: #{tpu_custom_call.1} parent=1 // pred_fallthru
      _
    %v42 = vld [vmem:[#allocation2] sm:$0xf]
    %v43 = vld [vmem:[#allocation5] sm:$0xf]
    %v44 = vld [vmem:[#allocation5 + $0x4] sm:$0xf]
    %v45 = vld [vmem:[#allocation5 + $0x8] sm:$0xf]
    %v46 = vld [vmem:[#allocation5 + $0xc] sm:$0xf]
    %v47 = vld [vmem:[#allocation5 + $0x10] sm:$0xf]
    %v48 = vld [vmem:[#allocation5 + $0x14] sm:$0xf]
    %v49 = vld [vmem:[#allocation5 + $0x18] sm:$0xf]
    %v50 = vld [vmem:[#allocation5 + $0x1c] sm:$0xf]
    %v51 = vld [vmem:[#allocation5 + $0x20] sm:$0xf]
    %v52 = vld [vmem:[#allocation5 + $0x24] sm:$0xf]
    %v53 = vld [vmem:[#allocation5 + $0x28] sm:$0xf]
    %v54 = vld [vmem:[#allocation5 + $0x2c] sm:$0xf]
    %v55 = vld [vmem:[#allocation5 + $0x30] sm:$0xf]
    %v56 = vld [vmem:[#allocation5 + $0x34] sm:$0xf]
    %v57 = vld [vmem:[#allocation5 + $0x38] sm:$0xf]
    %v58 = vld [vmem:[#allocation5 + $0x3c] sm:$0xf]
    %v59 = vld [vmem:[%s2] sm:$0x1]
    %v61 = vlaneseq
    %v62 = vshrl.u32 %v61, 7
    %v63 = vsub.s32 0, %v62
    %v64 = vrot.slane %v59, %v63
    %v82 = vunpack.c.l.b16 %v43
    %v83 = vunpack.c.l.b16 %v44
    %v84 = vunpack.c.l.b16 %v45
    %v85 = vunpack.c.l.b16 %v46
    %v86 = vunpack.c.l.b16 %v47
    %v87 = vunpack.c.l.b16 %v48
    %v88 = vunpack.c.l.b16 %v49
    %v89 = vunpack.c.l.b16 %v50
    %v90 = vunpack.c.l.b16 %v51
    %v91 = vunpack.c.l.b16 %v52
    %v92 = vunpack.c.l.b16 %v53
    %v93 = vunpack.c.l.b16 %v54
    %v94 = vunpack.c.l.b16 %v55
    %v95 = vunpack.c.l.b16 %v56
    %v96 = vunpack.c.l.b16 %v57
    %v97 = vunpack.c.l.b16 %v58
    %v98 = vpack.c.b16 %v83, %v82
    %v99 = vpack.c.b16 %v85, %v84
    %v100 = vpack.c.b16 %v87, %v86
    %v101 = vpack.c.b16 %v89, %v88
    %v102 = vpack.c.b16 %v91, %v90
    %v103 = vpack.c.b16 %v93, %v92
    %v104 = vpack.c.b16 %v95, %v94
    %v105 = vpack.c.b16 %v97, %v96
    %114 = vmatprep.subr.bf16.mxu0 0
    %115 = vmatpush1.bf16.msra.mxu0 %v98
    %116 = vmatprep.subr.bf16.mxu0 0
    %117 = vmatpush1.bf16.msra.mxu0 %v99
    %118 = vmatprep.subr.bf16.mxu0 0
    %119 = vmatpush1.bf16.msra.mxu0 %v100
    %120 = vmatprep.subr.bf16.mxu0 0
    %121 = vmatpush1.bf16.msra.mxu0 %v101
    %122 = vmatprep.subr.bf16.mxu0 0
    %123 = vmatpush1.bf16.msra.mxu0 %v102
    %124 = vmatprep.subr.bf16.mxu0 0
    %125 = vmatpush1.bf16.msra.mxu0 %v103
    %126 = vmatprep.subr.bf16.mxu0 0
    %127 = vmatpush1.bf16.msra.mxu0 %v104
    %128 = vmatprep.subr.bf16.mxu0 0
    %129 = vmatpush1.bf16.msra.mxu0 %v105
    %130 = vmatprep.subr.bf16.mxu0 0
    %131 = vmatpush1.bf16.msra.mxu0 0
    %132 = vmatprep.subr.bf16.mxu0 0
    %133 = vmatpush1.bf16.msra.mxu0 0
    %134 = vmatprep.subr.bf16.mxu0 0
    %135 = vmatpush1.bf16.msra.mxu0 0
    %136 = vmatprep.subr.bf16.mxu0 0
    %137 = vmatpush1.bf16.msra.mxu0 0
    %138 = vmatprep.subr.bf16.mxu0 0
    %139 = vmatpush1.bf16.msra.mxu0 0
    %140 = vmatprep.subr.bf16.mxu0 0
    %141 = vmatpush1.bf16.msra.mxu0 0
    %142 = vmatprep.subr.bf16.mxu0 0
    %143 = vmatpush1.bf16.msra.mxu0 0
    %144 = vmatprep.subr.bf16.mxu0 0
    %145 = vmatpush1.bf16.msra.mxu0 0
    %146 = vmatprep.mubr.bf16.mxu0 0
    %147 = vmatmul.mubr.bf16.gmra.mrb[0].mxu0 %v42
    %v148 = vpop.f32.mrb[0].mxu0
    %v149 = vadd.f32 %v64, %v148
    %v150 = vpop.f32.mrb[0].mxu0
    %v151 = vpop.f32.mrb[0].mxu0
    %v152 = vpop.f32.mrb[0].mxu0
    %153 = vdwg.mxu0
    %154 = vst [vmem:[#allocation7] sm:$0xff] %v149
    // Predicated region
    $region22: #{tpu_custom_call.1} parent=1 // pred_check
      _
    $region23: #{tpu_custom_call.1} parent=1 // pred_check_branch
      %156 = sbr.rel (0) target = $region25
    $region24: #{tpu_custom_call.1} parent=1 // pred_region
      %s158 = ssub.s32 128, 128
      %159 = vsyncadd [#allocation4], %s158
      %s161 = sshll.u32 [#allocation7], 4
      %s162 = int_to_ptr.vmem [resolvable:$true] %s161
      %164 = dma.vmem_to_hbm [thread:$0]  %s162, 128, %s3, [#allocation4]
    $region25: #{tpu_custom_call.1} parent=1 // pred_fallthru
      _
    // Predicated region
    $region26: #{tpu_custom_call.1} parent=1 // pred_check
      _
    $region27: #{tpu_custom_call.1} parent=1 // pred_check_branch
      %166 = sbr.rel (0) target = $region29
    $region28: #{tpu_custom_call.1} parent=1 // pred_region
      %167 = dma.done [#allocation4], 128
    $region29: #{tpu_custom_call.1} parent=1 // pred_fallthru
      _
    %168 = vsyncpa [#allocation3], 1
    %169 = vsyncpa [#allocation6], 1
    %170 = vsyncpa [#allocation4], 1

</llo_original>
